<compile_context>
chip_gen: v7x
topology: tpu7x:2x2x1
jax: 0.10.0
libtpu: 0.0.40
codegen_flags: <defaults>
</compile_context>

<pallas_src>
import math

import jax
import jax.numpy as jnp
from jax.experimental import pallas as pl
from jax.experimental.pallas import tpu as pltpu


_NEG_SLOPE = 0.01  # torch.nn.LeakyReLU default


def fits_kernel(w1_ref, b1_ref, w2_ref, b2_ref, x_ref, o_ref):
    # w1: (L*C, H*C)  b1: (1, H*C)  w2: (H*C, P*C)  b2: (1, P*C)
    # x block: (TN, L*C)   o block: (TN, P*C)   -- all lane-dense, no in-kernel relayouts
    x = x_ref[...]
    h = jnp.dot(x, w1_ref[...], preferred_element_type=jnp.float32) + b1_ref[...]
    h = jnp.where(h >= 0.0, h, _NEG_SLOPE * h)          # LeakyReLU
    o = jnp.dot(h, w2_ref[...], preferred_element_type=jnp.float32) + b2_ref[...]
    o_ref[...] = o.astype(o_ref.dtype)


def _vmem_capacity_bytes() -> int:
    """Generation-aware VMEM size (v5e/v6e: 128 MiB, v7x: 64 MiB per TC)."""
    try:
        return int(pltpu.get_tpu_info().vmem_capacity_bytes)
    except Exception:
        return 64 * 1024 * 1024  # conservative fallback (v7x per-TensorCore)


def _pick_row_tile(n_rows: int, lc: int, hc: int, pc: int, budget_bytes: int) -> int:
    """Largest multiple-of-8 row tile whose pipeline footprint fits the VMEM budget."""
    # resident weights/biases: constant index_map, but assume 2 pipeline buffers each
    w_bytes = 4 * 2 * (lc * hc + hc * pc + hc + pc)
    n_cap = ((n_rows + 7) // 8) * 8
    tn = 8
    for t in (16384, 8192, 4096, 2048, 1024, 512, 256, 128, 64, 32, 16, 8):
        if t > n_cap:
            continue
        act_bytes = 4 * t * (2 * (lc + pc) + hc)  # dbl-buffered in/out tiles + hidden temp
        if w_bytes + act_bytes <= budget_bytes:
            tn = t
            break
    # keep >= 2 grid steps when possible (software pipelining + v7x megacore sharding)
    while tn > 8 and pl.cdiv(n_rows, tn) < 2:
        tn //= 2
    return tn


def prepare_fits_params(w, W1, b1, W2, b2, C):
    """Hoisted, call-invariant weight preprocessing (do ONCE per set of weights).

    Folds the ortho-FFT circular convolution into Linear1 and expands both Linears to
    block-diagonal operators on the flattened (seq*channel) lane axis.
    """
    L = w.shape[1]
    # Cw[j, m] = w[(j - m) mod L] / sqrt(L)   (exact ortho rfft*rfft -> irfft circulant)
    idx = (jnp.arange(L)[:, None] - jnp.arange(L)[None, :]) % L
    Cw = w[0, idx] / math.sqrt(L)                                  # (L, L)
    W1c = (W1.astype(jnp.float32) @ Cw.astype(jnp.float32))        # (H, L)

    eyeC = jnp.eye(C, dtype=jnp.float32)
    # TODO(synk): for very large channel counts C the Kronecker expansion (x C^2 weight
    # bytes) no longer fits VMEM; that regime needs a streamed-weight / in-kernel relayout path.
    W1eT = jnp.kron(W1c.T, eyeC)                                   # (L*C, H*C)
    W2eT = jnp.kron(W2.T.astype(jnp.float32), eyeC)                # (H*C, P*C)
    b1e = jnp.repeat(b1.astype(jnp.float32), C).reshape(1, -1)     # (1, H*C)
    b2e = jnp.repeat(b2.astype(jnp.float32), C).reshape(1, -1)     # (1, P*C)
    return W1eT, b1e, W2eT, b2e


def fits_simple_forward(x, params):
    """x: (B, A, L, C) f32; params from prepare_fits_params.  Returns (B, A, P, C)."""
    W1eT, b1e, W2eT, b2e = params
    B, A, L, C = x.shape
    lc, hc = W1eT.shape
    hc2, pc = W2eT.shape
    assert lc == L * C and hc2 == hc
    P = pc // C

    n_rows = B * A
    x2 = x.reshape(n_rows, lc).astype(jnp.float32)     # FREE reshape (row-major), no relayout

    cap = _vmem_capacity_bytes()
    tn = _pick_row_tile(n_rows, lc, hc, pc, budget_bytes=int(cap * 0.6))
    grid = (pl.cdiv(n_rows, tn),)

    w_bytes = 4 * 2 * (lc * hc + hc * pc + hc + pc)
    act_bytes = 4 * tn * (2 * (lc + pc) + hc)
    vmem_limit = max(32 << 20, min(int(cap * 0.9), w_bytes + act_bytes + (8 << 20)))

    cost = pl.CostEstimate(
        flops=2 * n_rows * (lc * hc + hc * pc),
        transcendentals=0,
        bytes_accessed=4 * (n_rows * (lc + pc) + lc * hc + hc * pc + hc + pc),
    )

    out2 = pl.pallas_call(
        fits_kernel,
        out_shape=jax.ShapeDtypeStruct((n_rows, pc), jnp.float32),
        grid=grid,
        in_specs=[
            pl.BlockSpec((lc, hc), lambda i: (0, 0)),   # W1e.T (fused conv+Linear1), resident
            pl.BlockSpec((1, hc), lambda i: (0, 0)),    # b1e, resident
            pl.BlockSpec((hc, pc), lambda i: (0, 0)),   # W2e.T, resident
            pl.BlockSpec((1, pc), lambda i: (0, 0)),    # b2e, resident
            pl.BlockSpec((tn, lc), lambda i: (i, 0)),   # activation rows, tiled (lane-dense)
        ],
        out_specs=pl.BlockSpec((tn, pc), lambda i: (i, 0)),
        compiler_params=pltpu.CompilerParams(
            dimension_semantics=("parallel",),
            vmem_limit_bytes=vmem_limit,
        ),
        cost_estimate=cost,
    )(W1eT, b1e, W2eT, b2e, x2)

    return out2.reshape(B, A, P, C)                     # FREE reshape


def fits_simple_ref(x, w, W1, b1, W2, b2):
    """Pure-JAX reference mirroring the PyTorch forward exactly (real FFT path)."""
    B, A, L, C = x.shape
    Xf = jnp.fft.rfft(x, n=L, axis=2, norm="ortho")            # (B, A, F, C) complex
    Wf = jnp.fft.rfft(w, n=L, axis=1, norm="ortho")            # (1, F)
    Y = Xf * Wf[0][None, None, :, None]
    xc = jnp.fft.irfft(Y, n=L, axis=2, norm="ortho")           # (B, A, L, C)
    xp = jnp.transpose(xc, (0, 1, 3, 2))                       # (B, A, C, L)
    h = xp @ W1.T + b1
    h = jnp.where(h >= 0.0, h, _NEG_SLOPE * h)
    o = h @ W2.T + b2                                          # (B, A, C, P)
    return jnp.transpose(o, (0, 1, 3, 2))                      # (B, A, P, C)


if __name__ == "__main__":
    # Small shapes consistent with the module: batch=2, aux axis=8, seq_len=16,
    # channels=8, d_model(hidden)=32, pred_len=24.  (B*A = 16 -> 2 grid steps.)
    B, A, L, C = 2, 8, 16, 8
    H, P = 32, 24

    key = jax.random.PRNGKey(0)
    kx, kw, k1w, k1b, k2w, k2b = jax.random.split(key, 6)

    x = jax.random.normal(kx, (B, A, L, C), dtype=jnp.float32)

    # nn.Parameter: 0.02 * randn(1, embed_size)
    w = 0.02 * jax.random.normal(kw, (1, L), dtype=jnp.float32)

    # fc = Linear(L, H) -> LeakyReLU -> Linear(H, P), default PyTorch uniform init
    bnd1 = 1.0 / math.sqrt(L)
    W1 = jax.random.uniform(k1w, (H, L), minval=-bnd1, maxval=bnd1, dtype=jnp.float32)
    b1 = jax.random.uniform(k1b, (H,), minval=-bnd1, maxval=bnd1, dtype=jnp.float32)
    bnd2 = 1.0 / math.sqrt(H)
    W2 = jax.random.uniform(k2w, (P, H), minval=-bnd2, maxval=bnd2, dtype=jnp.float32)
    b2 = jax.random.uniform(k2b, (P,), minval=-bnd2, maxval=bnd2, dtype=jnp.float32)

    params = prepare_fits_params(w, W1, b1, W2, b2, C)   # hoisted, per-weights-only work
    out = jax.block_until_ready(fits_simple_forward(x, params))

    ref = jax.block_until_ready(fits_simple_ref(x, w, W1, b1, W2, b2))
    assert out.shape == (B, A, P, C), out.shape
    assert jnp.allclose(out, ref, atol=1e-4, rtol=1e-4), "mismatch vs FFT reference"

    print("KERNEL_OK")
</pallas_src>

<mosaic_0001>
module attributes {stable_mosaic.version = 11 : i64} {
  func.func @fits_kernel(%arg0: i32, %arg1: memref<128x256xf32, #tpu.memory_space<vmem>>, %arg2: memref<1x256xf32, #tpu.memory_space<vmem>>, %arg3: memref<256x192xf32, #tpu.memory_space<vmem>>, %arg4: memref<1x192xf32, #tpu.memory_space<vmem>>, %arg5: memref<8x128xf32, #tpu.memory_space<vmem>>, %arg6: memref<8x192xf32, #tpu.memory_space<vmem>>) attributes {dimension_semantics = [#tpu.dimension_semantics<parallel>], iteration_bounds = array<i64: 2>, scalar_prefetch = 0 : i64, scratch_operands = 0 : i64, tpu.core_type = #tpu.core_type<tc>, window_params = [{pipeline_mode = #tpu.pipeline_mode<synchronous>, transform_indices = @transform_0, window_bounds = array<i64: 128, 256>}, {pipeline_mode = #tpu.pipeline_mode<synchronous>, transform_indices = @transform_1, window_bounds = array<i64: 1, 256>}, {pipeline_mode = #tpu.pipeline_mode<synchronous>, transform_indices = @transform_2, window_bounds = array<i64: 256, 192>}, {pipeline_mode = #tpu.pipeline_mode<synchronous>, transform_indices = @transform_3, window_bounds = array<i64: 1, 192>}, {transform_indices = @transform_4, window_bounds = array<i64: 8, 128>}, {transform_indices = @transform_5, window_bounds = array<i64: 8, 192>}]} {
    %c0 = arith.constant 0 : index
    %c0_0 = arith.constant 0 : index
    %0 = vector.load %arg5[%c0, %c0_0] : memref<8x128xf32, #tpu.memory_space<vmem>>, vector<8x128xf32>
    %c0_1 = arith.constant 0 : index
    %c0_2 = arith.constant 0 : index
    %1 = vector.load %arg1[%c0_1, %c0_2] : memref<128x256xf32, #tpu.memory_space<vmem>>, vector<128x256xf32>
    %cst = arith.constant dense<0.000000e+00> : vector<8x256xf32>
    %2 = tpu.matmul %0, %1, %cst {dimension_numbers = #tpu.dot_dimension_numbers<[1], [0], [0], [1], [0, 0, 1, 1], [], []>} : vector<8x128xf32>, vector<128x256xf32>, vector<8x256xf32> -> vector<8x256xf32>
    %c0_3 = arith.constant 0 : index
    %c0_4 = arith.constant 0 : index
    %3 = vector.load %arg2[%c0_3, %c0_4] : memref<1x256xf32, #tpu.memory_space<vmem>>, vector<1x256xf32>
    %4 = vector.broadcast %3 : vector<1x256xf32> to vector<8x256xf32>
    %5 = arith.addf %2, %4 : vector<8x256xf32>
    %cst_5 = arith.constant 0.000000e+00 : f32
    %6 = vector.broadcast %cst_5 : f32 to vector<8x256xf32>
    %7 = arith.cmpf oge, %5, %6 : vector<8x256xf32>
    %cst_6 = arith.constant 0.00999999977 : f32
    %8 = vector.broadcast %cst_6 : f32 to vector<8x256xf32>
    %9 = arith.mulf %8, %5 : vector<8x256xf32>
    %10 = arith.select %7, %5, %9 : vector<8x256xi1>, vector<8x256xf32>
    %c0_7 = arith.constant 0 : index
    %c0_8 = arith.constant 0 : index
    %11 = vector.load %arg3[%c0_7, %c0_8] : memref<256x192xf32, #tpu.memory_space<vmem>>, vector<256x192xf32>
    %cst_9 = arith.constant dense<0.000000e+00> : vector<8x192xf32>
    %12 = tpu.matmul %10, %11, %cst_9 {dimension_numbers = #tpu.dot_dimension_numbers<[1], [0], [0], [1], [0, 0, 1, 1], [], []>} : vector<8x256xf32>, vector<256x192xf32>, vector<8x192xf32> -> vector<8x192xf32>
    %c0_10 = arith.constant 0 : index
    %c0_11 = arith.constant 0 : index
    %13 = vector.load %arg4[%c0_10, %c0_11] : memref<1x192xf32, #tpu.memory_space<vmem>>, vector<1x192xf32>
    %14 = vector.broadcast %13 : vector<1x192xf32> to vector<8x192xf32>
    %15 = arith.addf %12, %14 : vector<8x192xf32>
    %c0_12 = arith.constant 0 : index
    %c0_13 = arith.constant 0 : index
    %16 = vector.load %arg6[%c0_12, %c0_13] : memref<8x192xf32, #tpu.memory_space<vmem>>, vector<8x192xf32>
    tpu.vector_store %arg6[%c0_12, %c0_13], %15 {strides = array<i32>} : memref<8x192xf32, #tpu.memory_space<vmem>>, vector<8x192xf32>,
    return
  }
  func.func @transform_0(%arg0: i32) -> (i32, i32) {
    %c0_i32 = arith.constant 0 : i32
    %c0_i32_0 = arith.constant 0 : i32
    %c0_i32_1 = arith.constant 0 : i32
    return %c0_i32, %c0_i32_0 : i32, i32
  }
  func.func @transform_1(%arg0: i32) -> (i32, i32) {
    %c0_i32 = arith.constant 0 : i32
    %c0_i32_0 = arith.constant 0 : i32
    %c0_i32_1 = arith.constant 0 : i32
    return %c0_i32, %c0_i32_0 : i32, i32
  }
  func.func @transform_2(%arg0: i32) -> (i32, i32) {
    %c0_i32 = arith.constant 0 : i32
    %c0_i32_0 = arith.constant 0 : i32
    %c0_i32_1 = arith.constant 0 : i32
    return %c0_i32, %c0_i32_0 : i32, i32
  }
  func.func @transform_3(%arg0: i32) -> (i32, i32) {
    %c0_i32 = arith.constant 0 : i32
    %c0_i32_0 = arith.constant 0 : i32
    %c0_i32_1 = arith.constant 0 : i32
    return %c0_i32, %c0_i32_0 : i32, i32
  }
  func.func @transform_4(%arg0: i32) -> (i32, i32) {
    %c0_i32 = arith.constant 0 : i32
    %c0_i32_0 = arith.constant 0 : i32
    return %arg0, %c0_i32 : i32, i32
  }
  func.func @transform_5(%arg0: i32) -> (i32, i32) {
    %c0_i32 = arith.constant 0 : i32
    %c0_i32_0 = arith.constant 0 : i32
    return %arg0, %c0_i32 : i32, i32
  }
}

</mosaic_0001>

<llo_original>
// kernel: tpu_custom_call.1
$region0: #{tpu_custom_call.1}
  #allocation0 [shape = 'u32[]', space=smem, size = 0x4, offset = 0x4, fixed_abs, tag = 'smem constant byte address 0x4 - core index']
  #allocation1 [shape = 'u32[144,128]{1,0:T(1,128)}', space=vmem, size = 0x12000, scoped, tag = 'internal scratch']
  %s0 = inlined_call_operand.vmem [shape: f32[128,256], index: 0, kind: input, shape index: {}]
  %s1 = inlined_call_operand.vmem [shape: f32[1,256], index: 1, kind: input, shape index: {}]
  %s2 = inlined_call_operand.vmem [shape: f32[256,192], index: 2, kind: input, shape index: {}]
  %s3 = inlined_call_operand.vmem [shape: f32[1,192], index: 3, kind: input, shape index: {}]
  %s4 = inlined_call_operand.vmem [shape: f32[16,128], index: 4, kind: input, shape index: {}]
  %s5 = inlined_call_operand.hbm [shape: f32[16,192], index: 5, kind: output, shape index: {}]
  %s6 = sld [smem:[#allocation0]]
  $region53: #{tpu_custom_call.1} parent=0
    _
  %s8 = ssub.s32 1, %s6
  %s9 = scalar_select 0, %s8, %s6
  $region1: #{tpu_custom_call.1} parent=0
    #allocation2 [shape = 'u8[16384]{0}', space=vmem, size = 0x4000, scoped, tag = 'output window, operand 0']
    #allocation3 [shape = 's32[2]{0}', space=sflag, size = 0x8, scoped, tag = 'scoped memory for tpu_custom_call.1']
    %10 = vsyncpa [#allocation3], 0
    %s11 = scalar_lea.sflag [#allocation3], 1
    %12 = vsyncpa %s11, 0
    loop: start=0, step=1, limit=4
    $region2: #{tpu_custom_call.1} parent=1 // loop_pre_header
      _
    $region3: #{tpu_custom_call.1} parent=1 // loop_header
      %s14 = sphi 0, %s18
      %p15 = scmp.ge.s32.totalorder %s14, 4
      %s22 = sphi 0, %s22
      %s24 = sphi 0, %s22
      %s25 = sphi 0, %s24
      %s39 = sphi 0, %s25
      %s43 = sphi 0, %s43
      %s45 = sphi 0, %s43
      %s46 = sphi 0, %s45
      %s60 = sphi 0, %s46
      %s64 = sphi 0, %s64
      %s66 = sphi 0, %s64
      %s67 = sphi 0, %s66
      %s81 = sphi 0, %s67
      %s85 = sphi 0, %s85
      %s87 = sphi 0, %s85
      %s88 = sphi 0, %s87
      %s102 = sphi 0, %s88
      %s108 = sphi 0, %s110
      %s111 = sphi 0, %s108
      %s112 = sphi 0, %s111
      %s128 = sphi 0, %s112
      %s134 = sphi 0, %s136
      %s137 = sphi 0, %s134
      %s138 = sphi 0, %s137
      %s154 = sphi 0, %s138
    $region4: #{tpu_custom_call.1} parent=1 // loop_header_branch
      %17 = sbr.rel (%p15) target = $region8
    $region5: #{tpu_custom_call.1} parent=1 // loop_body
      %s19 = ssub.s32 %s14, 1
      %s20 = ssub.s32 %s14, 2
      %s21 = sadd.s32 %s14, 1
      %s23 = sadd.s32 %s22, 1
      %p26 = scmp.eq.s32.totalorder %s14, 1
      %p27 = scmp.ne.s32.totalorder %s22, %s24
      %p28 = scmp.eq.s32.totalorder %s14, 0
      %p29 = por %p27, %p28
      %p30 = scmp.ne.s32.totalorder %s22, %s24
      %p31 = scmp.eq.s32.totalorder %s19, 1
      %p32 = por %p30, %p31
      %p33 = scmp.ne.s32.totalorder %s24, %s25
      %p34 = scmp.eq.s32.totalorder %s19, 0
      %p35 = por %p33, %p34
      %p36 = scmp.ne.s32.totalorder %s24, %s25
      %p37 = scmp.eq.s32.totalorder %s20, 1
      %p38 = por %p36, %p37
      %p40 = scmp.ne.s32.totalorder %s25, %s39
      %p41 = scmp.eq.s32.totalorder %s20, 0
      %p42 = por %p40, %p41
      %s44 = sadd.s32 %s43, 1
      %p47 = scmp.eq.s32.totalorder %s14, 1
      %p48 = scmp.ne.s32.totalorder %s43, %s45
      %p49 = scmp.eq.s32.totalorder %s14, 0
      %p50 = por %p48, %p49
      %p51 = scmp.ne.s32.totalorder %s43, %s45
      %p52 = scmp.eq.s32.totalorder %s19, 1
      %p53 = por %p51, %p52
      %p54 = scmp.ne.s32.totalorder %s45, %s46
      %p55 = scmp.eq.s32.totalorder %s19, 0
      %p56 = por %p54, %p55
      %p57 = scmp.ne.s32.totalorder %s45, %s46
      %p58 = scmp.eq.s32.totalorder %s20, 1
      %p59 = por %p57, %p58
      %p61 = scmp.ne.s32.totalorder %s46, %s60
      %p62 = scmp.eq.s32.totalorder %s20, 0
      %p63 = por %p61, %p62
      %s65 = sadd.s32 %s64, 1
      %p68 = scmp.eq.s32.totalorder %s14, 1
      %p69 = scmp.ne.s32.totalorder %s64, %s66
      %p70 = scmp.eq.s32.totalorder %s14, 0
      %p71 = por %p69, %p70
      %p72 = scmp.ne.s32.totalorder %s64, %s66
      %p73 = scmp.eq.s32.totalorder %s19, 1
      %p74 = por %p72, %p73
      %p75 = scmp.ne.s32.totalorder %s66, %s67
      %p76 = scmp.eq.s32.totalorder %s19, 0
      %p77 = por %p75, %p76
      %p78 = scmp.ne.s32.totalorder %s66, %s67
      %p79 = scmp.eq.s32.totalorder %s20, 1
      %p80 = por %p78, %p79
      %p82 = scmp.ne.s32.totalorder %s67, %s81
      %p83 = scmp.eq.s32.totalorder %s20, 0
      %p84 = por %p82, %p83
      %s86 = sadd.s32 %s85, 1
      %p89 = scmp.eq.s32.totalorder %s14, 1
      %p90 = scmp.ne.s32.totalorder %s85, %s87
      %p91 = scmp.eq.s32.totalorder %s14, 0
      %p92 = por %p90, %p91
      %p93 = scmp.ne.s32.totalorder %s85, %s87
      %p94 = scmp.eq.s32.totalorder %s19, 1
      %p95 = por %p93, %p94
      %p96 = scmp.ne.s32.totalorder %s87, %s88
      %p97 = scmp.eq.s32.totalorder %s19, 0
      %p98 = por %p96, %p97
      %p99 = scmp.ne.s32.totalorder %s87, %s88
      %p100 = scmp.eq.s32.totalorder %s20, 1
      %p101 = por %p99, %p100
      %p103 = scmp.ne.s32.totalorder %s88, %s102
      %p104 = scmp.eq.s32.totalorder %s20, 0
      %p105 = por %p103, %p104
      %s106 = ssub.s32 %s14, %s21
      %p107 = scmp.eq.s32.totalorder %s106, 0
      %s109 = sadd.s32 %s108, 1
      %s110 = scalar_select %p107, %s108, %s109
      %p113 = pneg %p107
      %p114 = scmp.eq.s32.totalorder %s14, 1
      %p115 = por %p113, %p114
      %p116 = scmp.ne.s32.totalorder %s108, %s111
      %p117 = scmp.eq.s32.totalorder %s14, 0
      %p118 = por %p116, %p117
      %p119 = scmp.ne.s32.totalorder %s108, %s111
      %p120 = scmp.eq.s32.totalorder %s19, 1
      %p121 = por %p119, %p120
      %p122 = scmp.ne.s32.totalorder %s111, %s112
      %p123 = scmp.eq.s32.totalorder %s19, 0
      %p124 = por %p122, %p123
      %p125 = scmp.ne.s32.totalorder %s111, %s112
      %p126 = scmp.eq.s32.totalorder %s20, 1
      %p127 = por %p125, %p126
      %p129 = scmp.ne.s32.totalorder %s112, %s128
      %p130 = scmp.eq.s32.totalorder %s20, 0
      %p131 = por %p129, %p130
      %s132 = ssub.s32 %s14, %s21
      %p133 = scmp.eq.s32.totalorder %s132, 0
      %s135 = sadd.s32 %s134, 1
      %s136 = scalar_select %p133, %s134, %s135
      %p139 = pneg %p133
      %p140 = scmp.eq.s32.totalorder %s14, 1
      %p141 = por %p139, %p140
      %p142 = scmp.ne.s32.totalorder %s134, %s137
      %p143 = scmp.eq.s32.totalorder %s14, 0
      %p144 = por %p142, %p143
      %p145 = scmp.ne.s32.totalorder %s134, %s137
      %p146 = scmp.eq.s32.totalorder %s19, 1
      %p147 = por %p145, %p146
      %p148 = scmp.ne.s32.totalorder %s137, %s138
      %p149 = scmp.eq.s32.totalorder %s19, 0
      %p150 = por %p148, %p149
      %p151 = scmp.ne.s32.totalorder %s137, %s138
      %p152 = scmp.eq.s32.totalorder %s20, 1
      %p153 = por %p151, %p152
      %p155 = scmp.ne.s32.totalorder %s138, %s154
      %p156 = scmp.eq.s32.totalorder %s20, 0
      %p157 = por %p155, %p156
      %p158 = scmp.le.s32.totalorder 1, %s14
      %p159 = scmp.lt.s32.totalorder %s14, 3
      %p160 = pnand %p158, %p159
      %p161 = pneg %p160
      // Predicated region
      $region9: #{tpu_custom_call.1} parent=5 // pred_check
        _
      $region10: #{tpu_custom_call.1} parent=5 // pred_check_branch
        %163 = sbr.rel (%p160) target = $region12
      $region11: #{tpu_custom_call.1} parent=5 // pred_region
        %s164 = ssub.s32 %s14, 1
        // Predicated region
        $region13: #{tpu_custom_call.1} parent=11 // pred_check
          %p165 = pneg %p35
        $region14: #{tpu_custom_call.1} parent=11 // pred_check_branch
          %167 = sbr.rel (%p165) target = $region16
        $region15: #{tpu_custom_call.1} parent=11 // pred_region
          _
        $region16: #{tpu_custom_call.1} parent=11 // pred_fallthru
          _
        // Predicated region
        $region17: #{tpu_custom_call.1} parent=11 // pred_check
          %p168 = pneg %p56
        $region18: #{tpu_custom_call.1} parent=11 // pred_check_branch
          %170 = sbr.rel (%p168) target = $region20
        $region19: #{tpu_custom_call.1} parent=11 // pred_region
          _
        $region20: #{tpu_custom_call.1} parent=11 // pred_fallthru
          _
        // Predicated region
        $region21: #{tpu_custom_call.1} parent=11 // pred_check
          %p171 = pneg %p77
        $region22: #{tpu_custom_call.1} parent=11 // pred_check_branch
          %173 = sbr.rel (%p171) target = $region24
        $region23: #{tpu_custom_call.1} parent=11 // pred_region
          _
        $region24: #{tpu_custom_call.1} parent=11 // pred_fallthru
          _
        // Predicated region
        $region25: #{tpu_custom_call.1} parent=11 // pred_check
          %p174 = pneg %p98
        $region26: #{tpu_custom_call.1} parent=11 // pred_check_branch
          %176 = sbr.rel (%p174) target = $region28
        $region27: #{tpu_custom_call.1} parent=11 // pred_region
          _
        $region28: #{tpu_custom_call.1} parent=11 // pred_fallthru
          _
      $region12: #{tpu_custom_call.1} parent=5 // pred_fallthru
        _
      %p177 = scmp.lt.s32.totalorder %s14, 2
      // Predicated region
      $region29: #{tpu_custom_call.1} parent=5 // pred_check
        %p178 = pneg %p177
      $region30: #{tpu_custom_call.1} parent=5 // pred_check_branch
        %180 = sbr.rel (%p178) target = $region32
      $region31: #{tpu_custom_call.1} parent=5 // pred_region
        // Predicated region
        $region33: #{tpu_custom_call.1} parent=31 // pred_check
          %p181 = pneg %p118
        $region34: #{tpu_custom_call.1} parent=31 // pred_check_branch
          %183 = sbr.rel (%p181) target = $region36
        $region35: #{tpu_custom_call.1} parent=31 // pred_region
          %p184 = scmp.lt.s32.totalorder %s14, 1
          %s185 = scalar_select %p184, %s14, 1
          %s186 = smul.addr %s185, 8
          %s187 = scalar_lea.vmem %s4, %s186
        $region36: #{tpu_custom_call.1} parent=31 // pred_fallthru
          _
      $region32: #{tpu_custom_call.1} parent=5 // pred_fallthru
        _
      %p188 = scmp.le.s32.totalorder 1, %s14
      %p189 = scmp.lt.s32.totalorder %s14, 3
      %p190 = pnand %p188, %p189
      %p191 = pneg %p190
      // Predicated region
      $region37: #{tpu_custom_call.1} parent=5 // pred_check
        _
      $region38: #{tpu_custom_call.1} parent=5 // pred_check_branch
        %193 = sbr.rel (%p190) target = $region40
      $region39: #{tpu_custom_call.1} parent=5 // pred_region
        %s194 = ssub.s32 %s14, 1
        %p195 = pneg %p35
        %p196 = pneg %p32
        %p197 = pneg %p56
        %p198 = pneg %p53
        %p199 = pneg %p77
        %p200 = pneg %p74
        %p201 = pneg %p98
        %p202 = pneg %p95
        %p203 = scmp.lt.s32.totalorder %s19, 1
        %s204 = scalar_select %p203, %s19, 1
        %s205 = smul.addr %s204, 8
        %s206 = scalar_lea.vmem %s4, %s205
        %p207 = pneg %p124
        %p208 = pneg %p121
        %p209 = pneg %p150
        %p210 = pneg %p147
        %s211 = sand.u32 %s137, 1
        %s212 = scalar_lea.sflag [#allocation3], %s211
        %s213 = sand.u32 %s137, 1
        %s214 = smul.addr %s213, 16
        %s215 = scalar_lea.vmem [#allocation2], %s214
        %p216 = scmp.lt.s32.totalorder %s19, 1
        %s217 = scalar_select %p216, %s19, 1
        %s218 = smul.addr %s217, 8
        %s219 = scalar_lea.vmem %s4, %s218
        %v220 = vld [vmem:[%s219] sm:$0xff]
        %v221 = vld [vmem:[%s0] sm:$0xff]
        %v222 = vld [vmem:[%s0 + $0x8] sm:$0xff]
        %v223 = vld [vmem:[%s0 + $0x10] sm:$0xff]
        %v224 = vld [vmem:[%s0 + $0x18] sm:$0xff]
        %v225 = vld [vmem:[%s0 + $0x20] sm:$0xff]
        %v226 = vld [vmem:[%s0 + $0x28] sm:$0xff]
        %v227 = vld [vmem:[%s0 + $0x30] sm:$0xff]
        %v228 = vld [vmem:[%s0 + $0x38] sm:$0xff]
        %v229 = vld [vmem:[%s0 + $0x40] sm:$0xff]
        %v230 = vld [vmem:[%s0 + $0x48] sm:$0xff]
        %v231 = vld [vmem:[%s0 + $0x50] sm:$0xff]
        %v232 = vld [vmem:[%s0 + $0x58] sm:$0xff]
        %v233 = vld [vmem:[%s0 + $0x60] sm:$0xff]
        %v234 = vld [vmem:[%s0 + $0x68] sm:$0xff]
        %v235 = vld [vmem:[%s0 + $0x70] sm:$0xff]
        %v236 = vld [vmem:[%s0 + $0x78] sm:$0xff]
        %v237 = vld [vmem:[%s0 + $0x80] sm:$0xff]
        %v238 = vld [vmem:[%s0 + $0x88] sm:$0xff]
        %v239 = vld [vmem:[%s0 + $0x90] sm:$0xff]
        %v240 = vld [vmem:[%s0 + $0x98] sm:$0xff]
        %v241 = vld [vmem:[%s0 + $0xa0] sm:$0xff]
        %v242 = vld [vmem:[%s0 + $0xa8] sm:$0xff]
        %v243 = vld [vmem:[%s0 + $0xb0] sm:$0xff]
        %v244 = vld [vmem:[%s0 + $0xb8] sm:$0xff]
        %v245 = vld [vmem:[%s0 + $0xc0] sm:$0xff]
        %v246 = vld [vmem:[%s0 + $0xc8] sm:$0xff]
        %v247 = vld [vmem:[%s0 + $0xd0] sm:$0xff]
        %v248 = vld [vmem:[%s0 + $0xd8] sm:$0xff]
        %v249 = vld [vmem:[%s0 + $0xe0] sm:$0xff]
        %v250 = vld [vmem:[%s0 + $0xe8] sm:$0xff]
        %v251 = vld [vmem:[%s0 + $0xf0] sm:$0xff]
        %v252 = vld [vmem:[%s0 + $0xf8] sm:$0xff]
        %v253 = vld [vmem:[%s1] sm:$0x3]
        %v255 = vlaneseq
        %v256 = vshrl.u32 %v255, 7
        %v257 = vsub.s32 0, %v256
        %v258 = vrot.slane %v253, %v257
        %v259 = vlaneseq
        %v260 = vshrl.u32 %v259, 7
        %v261 = vsub.s32 1, %v260
        %v262 = vrot.slane %v253, %v261
        %265 = vmatprep.subr.mxu0 %v222
        %266 = vmatpush1.msra.mxu0 %v221
        %267 = vmatprep.subr.mxu0 %v224
        %268 = vmatpush1.msra.mxu0 %v223
        %269 = vmatprep.subr.mxu0 %v226
        %270 = vmatpush1.msra.mxu0 %v225
        %271 = vmatprep.subr.mxu0 %v228
        %272 = vmatpush1.msra.mxu0 %v227
        %273 = vmatprep.subr.mxu0 %v230
        %274 = vmatpush1.msra.mxu0 %v229
        %275 = vmatprep.subr.mxu0 %v232
        %276 = vmatpush1.msra.mxu0 %v231
        %277 = vmatprep.subr.mxu0 %v234
        %278 = vmatpush1.msra.mxu0 %v233
        %279 = vmatprep.subr.mxu0 %v236
        %280 = vmatpush1.msra.mxu0 %v235
        %281 = vmatprep.subr.mxu0 %v238
        %282 = vmatpush1.msra.mxu0 %v237
        %283 = vmatprep.subr.mxu0 %v240
        %284 = vmatpush1.msra.mxu0 %v239
        %285 = vmatprep.subr.mxu0 %v242
        %286 = vmatpush1.msra.mxu0 %v241
        %287 = vmatprep.subr.mxu0 %v244
        %288 = vmatpush1.msra.mxu0 %v243
        %289 = vmatprep.subr.mxu0 %v246
        %290 = vmatpush1.msra.mxu0 %v245
        %291 = vmatprep.subr.mxu0 %v248
        %292 = vmatpush1.msra.mxu0 %v247
        %293 = vmatprep.subr.mxu0 %v250
        %294 = vmatpush1.msra.mxu0 %v249
        %295 = vmatprep.subr.mxu0 %v252
        %296 = vmatpush1.msra.mxu0 %v251
        %297 = vmatprep.subr.mxu0 0.0
        %298 = vmatpush1.msra.mxu0 0.0
        %299 = vmatprep.subr.mxu0 0.0
        %300 = vmatpush1.msra.mxu0 0.0
        %301 = vmatprep.subr.mxu0 0.0
        %302 = vmatpush1.msra.mxu0 0.0
        %303 = vmatprep.subr.mxu0 0.0
        %304 = vmatpush1.msra.mxu0 0.0
        %305 = vmatprep.subr.mxu0 0.0
        %306 = vmatpush1.msra.mxu0 0.0
        %307 = vmatprep.subr.mxu0 0.0
        %308 = vmatpush1.msra.mxu0 0.0
        %309 = vmatprep.subr.mxu0 0.0
        %310 = vmatpush1.msra.mxu0 0.0
        %311 = vmatprep.subr.mxu0 0.0
        %312 = vmatpush1.msra.mxu0 0.0
        %313 = vmatprep.subr.mxu0 0.0
        %314 = vmatpush1.msra.mxu0 0.0
        %315 = vmatprep.subr.mxu0 0.0
        %316 = vmatpush1.msra.mxu0 0.0
        %317 = vmatprep.subr.mxu0 0.0
        %318 = vmatpush1.msra.mxu0 0.0
        %319 = vmatprep.subr.mxu0 0.0
        %320 = vmatpush1.msra.mxu0 0.0
        %321 = vmatprep.subr.mxu0 0.0
        %322 = vmatpush1.msra.mxu0 0.0
        %323 = vmatprep.subr.mxu0 0.0
        %324 = vmatpush1.msra.mxu0 0.0
        %325 = vmatprep.subr.mxu0 0.0
        %326 = vmatpush1.msra.mxu0 0.0
        %327 = vmatprep.subr.mxu0 0.0
        %328 = vmatpush1.msra.mxu0 0.0
        %329 = vmatprep.mubr.f32.mxu0 0.0
        %330 = vmatmul.mubr.f32.gmra.mrb[0].mxu0 %v220
        %v331 = vpop.f32.mrb[0].mxu0
        %v332 = vadd.f32 %v258, %v331
        %v333 = vpop.f32.mrb[0].mxu0
        %v334 = vadd.f32 %v262, %v333
        %335 = vdwg.mxu0
        %vm336 = vcmp.ge.f32.partialorder %v332, 0.0
        %vm337 = vcmp.ge.f32.partialorder %v334, 0.0
        %v338 = vmul.f32 %v332, 0.01
        %v339 = vmul.f32 %v334, 0.01
        %v340 = vsel %vm336, %v332, %v338
        %v341 = vsel %vm337, %v334, %v339
        %v342 = vld [vmem:[%s2] sm:$0xff]
        %v343 = vld [vmem:[%s2 + $0x8] sm:$0xff]
        %v344 = vld [vmem:[%s2 + $0x10] sm:$0xff]
        %v345 = vld [vmem:[%s2 + $0x18] sm:$0xff]
        %v346 = vld [vmem:[%s2 + $0x20] sm:$0xff]
        %v347 = vld [vmem:[%s2 + $0x28] sm:$0xff]
        %v348 = vld [vmem:[%s2 + $0x30] sm:$0xff]
        %v349 = vld [vmem:[%s2 + $0x38] sm:$0xff]
        %v350 = vld [vmem:[%s2 + $0x40] sm:$0xff]
        %v351 = vld [vmem:[%s2 + $0x48] sm:$0xff]
        %v352 = vld [vmem:[%s2 + $0x50] sm:$0xff]
        %v353 = vld [vmem:[%s2 + $0x58] sm:$0xff]
        %v354 = vld [vmem:[%s2 + $0x60] sm:$0xff]
        %v355 = vld [vmem:[%s2 + $0x68] sm:$0xff]
        %v356 = vld [vmem:[%s2 + $0x70] sm:$0xff]
        %v357 = vld [vmem:[%s2 + $0x78] sm:$0xff]
        %v358 = vld [vmem:[%s2 + $0x80] sm:$0xff]
        %v359 = vld [vmem:[%s2 + $0x88] sm:$0xff]
        %v360 = vld [vmem:[%s2 + $0x90] sm:$0xff]
        %v361 = vld [vmem:[%s2 + $0x98] sm:$0xff]
        %v362 = vld [vmem:[%s2 + $0xa0] sm:$0xff]
        %v363 = vld [vmem:[%s2 + $0xa8] sm:$0xff]
        %v364 = vld [vmem:[%s2 + $0xb0] sm:$0xff]
        %v365 = vld [vmem:[%s2 + $0xb8] sm:$0xff]
        %v366 = vld [vmem:[%s2 + $0xc0] sm:$0xff]
        %v367 = vld [vmem:[%s2 + $0xc8] sm:$0xff]
        %v368 = vld [vmem:[%s2 + $0xd0] sm:$0xff]
        %v369 = vld [vmem:[%s2 + $0xd8] sm:$0xff]
        %v370 = vld [vmem:[%s2 + $0xe0] sm:$0xff]
        %v371 = vld [vmem:[%s2 + $0xe8] sm:$0xff]
        %v372 = vld [vmem:[%s2 + $0xf0] sm:$0xff]
        %v373 = vld [vmem:[%s2 + $0xf8] sm:$0xff]
        %v374 = vld [vmem:[%s2 + $0x100] sm:$0xff]
        %v375 = vld [vmem:[%s2 + $0x108] sm:$0xff]
        %v376 = vld [vmem:[%s2 + $0x110] sm:$0xff]
        %v377 = vld [vmem:[%s2 + $0x118] sm:$0xff]
        %v378 = vld [vmem:[%s2 + $0x120] sm:$0xff]
        %v379 = vld [vmem:[%s2 + $0x128] sm:$0xff]
        %v380 = vld [vmem:[%s2 + $0x130] sm:$0xff]
        %v381 = vld [vmem:[%s2 + $0x138] sm:$0xff]
        %v382 = vld [vmem:[%s2 + $0x140] sm:$0xff]
        %v383 = vld [vmem:[%s2 + $0x148] sm:$0xff]
        %v384 = vld [vmem:[%s2 + $0x150] sm:$0xff]
        %v385 = vld [vmem:[%s2 + $0x158] sm:$0xff]
        %v386 = vld [vmem:[%s2 + $0x160] sm:$0xff]
        %v387 = vld [vmem:[%s2 + $0x168] sm:$0xff]
        %v388 = vld [vmem:[%s2 + $0x170] sm:$0xff]
        %v389 = vld [vmem:[%s2 + $0x178] sm:$0xff]
        %v390 = vld [vmem:[%s2 + $0x180] sm:$0xff]
        %v391 = vld [vmem:[%s2 + $0x188] sm:$0xff]
        %v392 = vld [vmem:[%s2 + $0x190] sm:$0xff]
        %v393 = vld [vmem:[%s2 + $0x198] sm:$0xff]
        %v394 = vld [vmem:[%s2 + $0x1a0] sm:$0xff]
        %v395 = vld [vmem:[%s2 + $0x1a8] sm:$0xff]
        %v396 = vld [vmem:[%s2 + $0x1b0] sm:$0xff]
        %v397 = vld [vmem:[%s2 + $0x1b8] sm:$0xff]
        %v398 = vld [vmem:[%s2 + $0x1c0] sm:$0xff]
        %v399 = vld [vmem:[%s2 + $0x1c8] sm:$0xff]
        %v400 = vld [vmem:[%s2 + $0x1d0] sm:$0xff]
        %v401 = vld [vmem:[%s2 + $0x1d8] sm:$0xff]
        %v402 = vld [vmem:[%s2 + $0x1e0] sm:$0xff]
        %v403 = vld [vmem:[%s2 + $0x1e8] sm:$0xff]
        %v404 = vld [vmem:[%s2 + $0x1f0] sm:$0xff]
        %v405 = vld [vmem:[%s2 + $0x1f8] sm:$0xff]
        %v406 = vld [vmem:[%s3] sm:$0x3]
        %v408 = vlaneseq
        %v409 = vshrl.u32 %v408, 7
        %v410 = vsub.s32 0, %v409
        %v411 = vrot.slane %v406, %v410
        %v412 = vlaneseq
        %v413 = vshrl.u32 %v412, 7
        %v414 = vsub.s32 1, %v413
        %v415 = vrot.slane %v406, %v414
        %418 = vmatprep.subr.mxu0 %v343
        %419 = vmatpush1.msra.mxu0 %v342
        %420 = vmatprep.subr.mxu0 %v345
        %421 = vmatpush1.msra.mxu0 %v344
        %422 = vmatprep.subr.mxu0 %v347
        %423 = vmatpush1.msra.mxu0 %v346
        %424 = vmatprep.subr.mxu0 %v349
        %425 = vmatpush1.msra.mxu0 %v348
        %426 = vmatprep.subr.mxu0 %v351
        %427 = vmatpush1.msra.mxu0 %v350
        %428 = vmatprep.subr.mxu0 %v353
        %429 = vmatpush1.msra.mxu0 %v352
        %430 = vmatprep.subr.mxu0 %v355
        %431 = vmatpush1.msra.mxu0 %v354
        %432 = vmatprep.subr.mxu0 %v357
        %433 = vmatpush1.msra.mxu0 %v356
        %434 = vmatprep.subr.mxu0 %v359
        %435 = vmatpush1.msra.mxu0 %v358
        %436 = vmatprep.subr.mxu0 %v361
        %437 = vmatpush1.msra.mxu0 %v360
        %438 = vmatprep.subr.mxu0 %v363
        %439 = vmatpush1.msra.mxu0 %v362
        %440 = vmatprep.subr.mxu0 %v365
        %441 = vmatpush1.msra.mxu0 %v364
        %442 = vmatprep.subr.mxu0 %v367
        %443 = vmatpush1.msra.mxu0 %v366
        %444 = vmatprep.subr.mxu0 %v369
        %445 = vmatpush1.msra.mxu0 %v368
        %446 = vmatprep.subr.mxu0 %v371
        %447 = vmatpush1.msra.mxu0 %v370
        %448 = vmatprep.subr.mxu0 %v373
        %449 = vmatpush1.msra.mxu0 %v372
        %450 = vmatprep.subr.mxu0 %v375
        %451 = vmatpush1.msra.mxu0 %v374
        %452 = vmatprep.subr.mxu0 %v377
        %453 = vmatpush1.msra.mxu0 %v376
        %454 = vmatprep.subr.mxu0 %v379
        %455 = vmatpush1.msra.mxu0 %v378
        %456 = vmatprep.subr.mxu0 %v381
        %457 = vmatpush1.msra.mxu0 %v380
        %458 = vmatprep.subr.mxu0 %v383
        %459 = vmatpush1.msra.mxu0 %v382
        %460 = vmatprep.subr.mxu0 %v385
        %461 = vmatpush1.msra.mxu0 %v384
        %462 = vmatprep.subr.mxu0 %v387
        %463 = vmatpush1.msra.mxu0 %v386
        %464 = vmatprep.subr.mxu0 %v389
        %465 = vmatpush1.msra.mxu0 %v388
        %466 = vmatprep.subr.mxu0 %v391
        %467 = vmatpush1.msra.mxu0 %v390
        %468 = vmatprep.subr.mxu0 %v393
        %469 = vmatpush1.msra.mxu0 %v392
        %470 = vmatprep.subr.mxu0 %v395
        %471 = vmatpush1.msra.mxu0 %v394
        %472 = vmatprep.subr.mxu0 %v397
        %473 = vmatpush1.msra.mxu0 %v396
        %474 = vmatprep.subr.mxu0 %v399
        %475 = vmatpush1.msra.mxu0 %v398
        %476 = vmatprep.subr.mxu0 %v401
        %477 = vmatpush1.msra.mxu0 %v400
        %478 = vmatprep.subr.mxu0 %v403
        %479 = vmatpush1.msra.mxu0 %v402
        %480 = vmatprep.subr.mxu0 %v405
        %481 = vmatpush1.msra.mxu0 %v404
        %482 = vmatprep.mubr.f32.mxu0 %v341
        %483 = vmatmul.mubr.f32.gmra.mrb[0].mxu0 %v340
        %v484 = vpop.f32.mrb[0].mxu0
        %v485 = vadd.f32 %v411, %v484
        %v486 = vpop.f32.mrb[0].mxu0
        %v487 = vadd.f32 %v415, %v486
        %488 = vdwg.mxu0
        %489 = vst [vmem:[%s215] sm:$0xff] %v485
        %vm490 = vcmask 523264
        %491 = vst.msk [vmem:[%s215 + $0x8] sm:$0xff] %vm490, %v487
        %s492 = sand.u32 %s137, 1
        %s493 = scalar_lea.sflag [#allocation3], %s492
        %s494 = sand.u32 %s137, 1
        %s495 = smul.addr %s494, 16
        %s496 = scalar_lea.vmem [#allocation2], %s495
        // Predicated region
        $region41: #{tpu_custom_call.1} parent=39 // pred_check
          %p497 = pneg %p147
        $region42: #{tpu_custom_call.1} parent=39 // pred_check_branch
          %499 = sbr.rel (%p497) target = $region44
        $region43: #{tpu_custom_call.1} parent=39 // pred_region
          %s501 = ssub.s32 256, 256
          %502 = vsyncadd %s493, %s501
          %s503 = smul.addr %s19, 2
          %s504 = smul.addr %s503, 128
          %s505 = scalar_lea.hbm %s5, %s504
          %s507 = sshll.u32 %s496, 4
          %s508 = int_to_ptr.vmem [resolvable:$true] %s507
          %510 = dma.vmem_to_hbm [thread:$0]  %s508, 256, %s505, %s493
        $region44: #{tpu_custom_call.1} parent=39 // pred_fallthru
          _
      $region40: #{tpu_custom_call.1} parent=5 // pred_fallthru
        _
      %p511 = scmp.le.s32.totalorder 2, %s14
      // Predicated region
      $region45: #{tpu_custom_call.1} parent=5 // pred_check
        %p512 = pneg %p511
      $region46: #{tpu_custom_call.1} parent=5 // pred_check_branch
        %514 = sbr.rel (%p512) target = $region48
      $region47: #{tpu_custom_call.1} parent=5 // pred_region
        %s515 = ssub.s32 %s14, 2
        // Predicated region
        $region49: #{tpu_custom_call.1} parent=47 // pred_check
          %p516 = pneg %p153
        $region50: #{tpu_custom_call.1} parent=47 // pred_check_branch
          %518 = sbr.rel (%p516) target = $region52
        $region51: #{tpu_custom_call.1} parent=47 // pred_region
          %s519 = sand.u32 %s138, 1
          %s520 = scalar_lea.sflag [#allocation3], %s519
          %s521 = sand.u32 %s138, 1
          %s522 = smul.addr %s521, 16
          %s523 = scalar_lea.vmem [#allocation2], %s522
          %524 = dma.done %s520, 256
        $region52: #{tpu_custom_call.1} parent=47 // pred_fallthru
          _
      $region48: #{tpu_custom_call.1} parent=5 // pred_fallthru
        _
    $region6: #{tpu_custom_call.1} parent=1 // loop_footer
      %s18 = sadd.s32 1, %s14
    $region7: #{tpu_custom_call.1} parent=1 // loop_footer_branch
      %13 = sbr.rel target = $region3
    $region8: #{tpu_custom_call.1} parent=1 // loop_exit
      _
    %525 = vsyncpa [#allocation3], 1
    %s526 = scalar_lea.sflag [#allocation3], 1
    %527 = vsyncpa %s526, 1

</llo_original>
